<compile_context>
chip_gen: v7x
topology: tpu7x:2x2x1
jax: 0.10.0
libtpu: 0.0.40
codegen_flags: <defaults>
</compile_context>

<pallas_src>
import math

import jax
import jax.numpy as jnp
from jax import lax
from jax.experimental import pallas as pl
from jax.experimental.pallas import tpu as pltpu


def _make_kernel(T, Cb, Cout, kernel_size, dilations):
    nb = len(dilations)

    def kernel(x_ref, w1_ref, s1_ref, b1_ref, w2_ref, s2_ref, b2_ref, out_ref):
        x = x_ref[...]                                # (Cin, TL) bf16
        TL = x.shape[1]

        # Fused residual + all-branch 1x1 convs: one MXU matmul + folded BN.
        h_all = jnp.dot(w1_ref[...], x, preferred_element_type=jnp.float32)
        h_all = h_all * s1_ref[...] + b1_ref[...]     # (Cout + nb*Cb, TL) f32

        # Temporal index of each lane (tile start is a multiple of T).
        t_idx = lax.broadcasted_iota(jnp.int32, (1, TL), 1) % T

        # Precompute 0/1 f32 masks once per distinct nonzero tap offset.
        offsets = set()
        for b in range(nb):
            ks, dil = kernel_size[b], dilations[b]
            pad = (ks + (ks - 1) * (dil - 1) - 1) // 2
            for k in range(ks):
                off = k * dil - pad
                if off != 0:
                    offsets.add(off)
        masks = {
            off: jnp.logical_and(t_idx + off >= 0, t_idx + off < T)
                    .astype(jnp.float32)
            for off in sorted(offsets)
        }

        for b in range(nb):
            ks, dil = kernel_size[b], dilations[b]
            pad = (ks + (ks - 1) * (dil - 1) - 1) // 2

            # Branch 1x1 output (BN already folded in) + ReLU.
            h = jnp.maximum(h_all[Cout + b * Cb:Cout + (b + 1) * Cb, :], 0.0)

            # Stack the ks shifted/masked copies on sublanes -> single matmul
            # with contraction ks*Cb instead of ks tiny matmuls.
            taps = []
            for k in range(ks):
                off = k * dil - pad
                if off == 0:
                    taps.append(h.astype(jnp.bfloat16))
                else:
                    rolled = pltpu.roll(h, shift=(-off) % TL, axis=1)
                    taps.append((rolled * masks[off]).astype(jnp.bfloat16))
            hk = jnp.concatenate(taps, axis=0)        # (ks*Cb, TL) bf16

            w2b = w2_ref[b][:, :ks * Cb]              # (Cb, ks*Cb) bf16
            y = jnp.dot(w2b, hk, preferred_element_type=jnp.float32)
            y = y * s2_ref[b] + b2_ref[b]             # folded BN2
            y = y + h_all[b * Cb:(b + 1) * Cb, :]     # residual slice
            out_ref[b * Cb:(b + 1) * Cb, :] = y.astype(out_ref.dtype)

    return kernel


def multiscale_tcn(x, adaA, params, kernel_size, dilations):
    """x: (N, Cin, V, T) float32.  Returns (N, Cout, V, T) float32."""
    del adaA  # unused in the reference forward (dead code path)
    w1, s1, b1, w2, s2, b2, wr, sr, br = params
    N, Cin, V, T = x.shape
    nb, Cb = w1.shape[0], w1.shape[1]
    Cout = wr.shape[0]
    ks_max = w2.shape[1]

    # --- lane-axis tiling: fold N into lanes; tiles are multiples of T & 128 ---
    L = N * V * T
    base = T * (128 // math.gcd(T, 128))              # lcm(T, 128)
    n_base = (L + base - 1) // base
    k = min(max(1, 2048 // base), n_base)
    if n_base >= 2:                                   # keep >=2 grid steps (v7x: 2 TCs)
        k = min(k, max(1, n_base // 2))
    tile_lanes = base * k
    L_pad = ((L + tile_lanes - 1) // tile_lanes) * tile_lanes
    num_tiles = L_pad // tile_lanes

    # --- inputs: channels-major, lane-padded, bf16 matmul operands ---
    x2 = jnp.transpose(x, (1, 0, 2, 3)).reshape(Cin, L)
    if L_pad > L:
        x2 = jnp.pad(x2, ((0, 0), (0, L_pad - L)))
    x2 = x2.astype(jnp.bfloat16)

    # Fuse residual + branch 1x1 conv weights / folded BN params into one stack.
    w1_stacked = jnp.concatenate([wr, w1.reshape(nb * Cb, Cin)], axis=0
                                 ).astype(jnp.bfloat16)
    s1_stacked = jnp.concatenate([sr, s1.reshape(nb * Cb, 1)], axis=0
                                 ).astype(jnp.float32)
    b1_stacked = jnp.concatenate([br, b1.reshape(nb * Cb, 1)], axis=0
                                 ).astype(jnp.float32)

    # (nb, ks, Cb_out, Cb_in) -> (nb, Cb_out, ks*Cb_in): merged-tap weights.
    w2_flat = jnp.transpose(w2, (0, 2, 1, 3)).reshape(nb, Cb, ks_max * Cb
                                                      ).astype(jnp.bfloat16)
    s2f = s2.astype(jnp.float32)
    b2f = b2.astype(jnp.float32)

    kern = _make_kernel(T, Cb, Cout, kernel_size, dilations)

    def full_spec(a):
        nd = a.ndim
        return pl.BlockSpec(a.shape, lambda i, _nd=nd: (0,) * _nd)

    out2 = pl.pallas_call(
        kern,
        out_shape=jax.ShapeDtypeStruct((Cout, L_pad), jnp.float32),
        grid_spec=pltpu.PrefetchScalarGridSpec(
            num_scalar_prefetch=0,
            grid=(num_tiles,),
            in_specs=[
                pl.BlockSpec((Cin, tile_lanes), lambda i: (0, i)),
                full_spec(w1_stacked), full_spec(s1_stacked), full_spec(b1_stacked),
                full_spec(w2_flat), full_spec(s2f), full_spec(b2f),
            ],
            out_specs=pl.BlockSpec((Cout, tile_lanes), lambda i: (0, i)),
        ),
        compiler_params=pltpu.CompilerParams(
            dimension_semantics=("parallel",)),
    )(x2, w1_stacked, s1_stacked, b1_stacked, w2_flat, s2f, b2f)

    out = out2[:, :L].reshape(Cout, N, V, T)
    return jnp.transpose(out, (1, 0, 2, 3))


def init_params(key, Cin, Cout, kernel_size, dilations):
    """Deterministic synthetic parameters; BN (eval mode) folded into scale/bias."""
    nb = len(dilations)
    assert Cout % nb == 0
    Cb = Cout // nb
    ks_max = max(kernel_size)
    eps = 1e-5
    keys = iter(jax.random.split(key, 32))

    def nrm(shape, scale=0.2):
        return (scale * jax.random.normal(next(keys), shape)).astype(jnp.float32)

    def pos(shape):
        return jax.random.uniform(next(keys), shape, minval=0.5, maxval=1.5
                                  ).astype(jnp.float32)

    def fold(gamma, beta, mean, var, conv_bias):
        s = gamma / jnp.sqrt(var + eps)
        return s, beta + (conv_bias - mean) * s

    w1 = nrm((nb, Cb, Cin))
    s1, b1 = fold(pos((nb, Cb)), nrm((nb, Cb), 0.1),
                  nrm((nb, Cb), 0.1), pos((nb, Cb)), nrm((nb, Cb), 0.1))
    w2 = nrm((nb, ks_max, Cb, Cb))
    s2, b2 = fold(pos((nb, Cb)), nrm((nb, Cb), 0.1),
                  nrm((nb, Cb), 0.1), pos((nb, Cb)), nrm((nb, Cb), 0.1))
    wr = nrm((Cout, Cin))
    sr, br = fold(pos((Cout,)), nrm((Cout,), 0.1),
                  nrm((Cout,), 0.1), pos((Cout,)), nrm((Cout,), 0.1))

    return (w1, s1[..., None], b1[..., None],
            w2, s2[..., None], b2[..., None],
            wr, sr[:, None], br[:, None])


def reference_forward(x, params, kernel_size, dilations):
    """Pure-JAX reference of the same math (NCHW einsums).  Matmul operands are
    cast to bf16 (f32 accumulation) to mirror the kernel's MXU precision."""
    w1, s1, b1, w2, s2, b2, wr, sr, br = params
    N, Cin, V, T = x.shape
    nb, Cb = w1.shape[0], w1.shape[1]
    bf = jnp.bfloat16
    xb = x.astype(bf)

    res = (jnp.einsum('oc,ncvt->novt', wr.astype(bf), xb,
                      preferred_element_type=jnp.float32)
           * sr[None, :, :, None] + br[None, :, :, None])
    outs = []
    for b in range(nb):
        ks, dil = kernel_size[b], dilations[b]
        pad = (ks + (ks - 1) * (dil - 1) - 1) // 2
        h = jnp.einsum('oc,ncvt->novt', w1[b].astype(bf), xb,
                       preferred_element_type=jnp.float32)
        h = h * s1[b][None, :, :, None] + b1[b][None, :, :, None]
        h = jnp.maximum(h, 0.0).astype(bf)
        hp = jnp.pad(h, ((0, 0), (0, 0), (0, 0), (pad, pad)))
        y = jnp.zeros((N, Cb, V, T), jnp.float32)
        for k in range(ks):
            y = y + jnp.einsum('oc,ncvt->novt', w2[b, k].astype(bf),
                               hp[..., k * dil:k * dil + T],
                               preferred_element_type=jnp.float32)
        y = y * s2[b][None, :, :, None] + b2[b][None, :, :, None]
        outs.append(y)
    return jnp.concatenate(outs, axis=1) + res


if __name__ == "__main__":
    key = jax.random.PRNGKey(0)
    kx, ka, kp = jax.random.split(key, 3)

    N, Cin, Cout, V, T = 2, 4, 8, 16, 16
    kernel_size = [3, 3]
    dilations = [1, 2]

    x = jax.random.normal(kx, (N, Cin, V, T), dtype=jnp.float32)
    adaA = jax.random.normal(ka, (N, Cin, V, V), dtype=jnp.float32)  # unused
    params = init_params(kp, Cin, Cout, kernel_size, dilations)

    out = multiscale_tcn(x, adaA, params, kernel_size, dilations)
    out = jax.block_until_ready(out)

    ref = reference_forward(x, params, kernel_size, dilations)
    assert out.shape == (N, Cout, V, T)
    max_err = float(jnp.max(jnp.abs(out - ref)))
    assert jnp.allclose(out, ref, atol=1e-2, rtol=1e-2), max_err

    print("KERNEL_OK")
</pallas_src>

<mosaic_0001>
module attributes {stable_mosaic.version = 11 : i64} {
  func.func @kernel(%arg0: i32, %arg1: memref<4x256xbf16, #tpu.memory_space<vmem>>, %arg2: memref<16x4xbf16, #tpu.memory_space<vmem>>, %arg3: memref<16x1xf32, #tpu.memory_space<vmem>>, %arg4: memref<16x1xf32, #tpu.memory_space<vmem>>, %arg5: memref<2x4x12xbf16, #tpu.memory_space<vmem>>, %arg6: memref<2x4x1xf32, #tpu.memory_space<vmem>>, %arg7: memref<2x4x1xf32, #tpu.memory_space<vmem>>, %arg8: memref<8x256xf32, #tpu.memory_space<vmem>>) attributes {dimension_semantics = [#tpu.dimension_semantics<parallel>], iteration_bounds = array<i64: 2>, scalar_prefetch = 0 : i64, scratch_operands = 0 : i64, tpu.core_type = #tpu.core_type<tc>, window_params = [{transform_indices = @transform_0, window_bounds = array<i64: 4, 256>}, {pipeline_mode = #tpu.pipeline_mode<synchronous>, transform_indices = @transform_1, window_bounds = array<i64: 16, 4>}, {pipeline_mode = #tpu.pipeline_mode<synchronous>, transform_indices = @transform_2, window_bounds = array<i64: 16, 1>}, {pipeline_mode = #tpu.pipeline_mode<synchronous>, transform_indices = @transform_3, window_bounds = array<i64: 16, 1>}, {pipeline_mode = #tpu.pipeline_mode<synchronous>, transform_indices = @transform_4, window_bounds = array<i64: 2, 4, 12>}, {pipeline_mode = #tpu.pipeline_mode<synchronous>, transform_indices = @transform_5, window_bounds = array<i64: 2, 4, 1>}, {pipeline_mode = #tpu.pipeline_mode<synchronous>, transform_indices = @transform_6, window_bounds = array<i64: 2, 4, 1>}, {transform_indices = @transform_7, window_bounds = array<i64: 8, 256>}]} {
    %c0 = arith.constant 0 : index
    %c0_0 = arith.constant 0 : index
    %0 = vector.load %arg1[%c0, %c0_0] : memref<4x256xbf16, #tpu.memory_space<vmem>>, vector<4x256xbf16>
    %c0_1 = arith.constant 0 : index
    %c0_2 = arith.constant 0 : index
    %1 = vector.load %arg2[%c0_1, %c0_2] : memref<16x4xbf16, #tpu.memory_space<vmem>>, vector<16x4xbf16>
    %cst = arith.constant dense<0.000000e+00> : vector<16x256xf32>
    %2 = tpu.matmul %1, %0, %cst {dimension_numbers = #tpu.dot_dimension_numbers<[1], [0], [0], [1], [0, 0, 1, 1], [], []>} : vector<16x4xbf16>, vector<4x256xbf16>, vector<16x256xf32> -> vector<16x256xf32>
    %c0_3 = arith.constant 0 : index
    %c0_4 = arith.constant 0 : index
    %3 = vector.load %arg3[%c0_3, %c0_4] : memref<16x1xf32, #tpu.memory_space<vmem>>, vector<16x1xf32>
    %4 = vector.broadcast %3 : vector<16x1xf32> to vector<16x256xf32>
    %5 = arith.mulf %2, %4 : vector<16x256xf32>
    %c0_5 = arith.constant 0 : index
    %c0_6 = arith.constant 0 : index
    %6 = vector.load %arg4[%c0_5, %c0_6] : memref<16x1xf32, #tpu.memory_space<vmem>>, vector<16x1xf32>
    %7 = vector.broadcast %6 : vector<16x1xf32> to vector<16x256xf32>
    %8 = arith.addf %5, %7 : vector<16x256xf32>
    %9 = tpu.iota {dimensions = array<i32: 1>} : vector<1x256xi32>
    %c16_i32 = arith.constant 16 : i32
    %c0_i32 = arith.constant 0 : i32
    %10 = arith.cmpi eq, %c16_i32, %c0_i32 : i32
    %c1_i32 = arith.constant 1 : i32
    %11 = arith.select %10, %c1_i32, %c16_i32 : i32
    %12 = vector.broadcast %11 : i32 to vector<1x256xi32>
    %13 = arith.remsi %9, %12 : vector<1x256xi32>
    %c0_i32_7 = arith.constant 0 : i32
    %14 = vector.broadcast %c0_i32_7 : i32 to vector<1x256xi32>
    %15 = arith.cmpi ne, %13, %14 : vector<1x256xi32>
    %c0_i32_8 = arith.constant 0 : i32
    %16 = vector.broadcast %c0_i32_8 : i32 to vector<1x256xi32>
    %17 = arith.cmpi slt, %13, %16 : vector<1x256xi32>
    %c0_i32_9 = arith.constant 0 : i32
    %18 = arith.cmpi slt, %11, %c0_i32_9 : i32
    %19 = vector.broadcast %18 : i1 to vector<1x256xi1>
    %20 = vector.broadcast %19 : vector<1x256xi1> to vector<1x256xi1>
    %21 = arith.xori %17, %20 : vector<1x256xi1>
    %22 = arith.andi %21, %15 : vector<1x256xi1>
    %23 = vector.broadcast %11 : i32 to vector<1x256xi32>
    %24 = arith.addi %13, %23 : vector<1x256xi32>
    %25 = arith.select %22, %24, %13 : vector<1x256xi1>, vector<1x256xi32>
    %c-2_i32 = arith.constant -2 : i32
    %26 = vector.broadcast %c-2_i32 : i32 to vector<1x256xi32>
    %27 = arith.addi %25, %26 : vector<1x256xi32>
    %c0_i32_10 = arith.constant 0 : i32
    %28 = vector.broadcast %c0_i32_10 : i32 to vector<1x256xi32>
    %29 = arith.cmpi sge, %27, %28 : vector<1x256xi32>
    %c-2_i32_11 = arith.constant -2 : i32
    %30 = vector.broadcast %c-2_i32_11 : i32 to vector<1x256xi32>
    %31 = arith.addi %25, %30 : vector<1x256xi32>
    %c16_i32_12 = arith.constant 16 : i32
    %32 = vector.broadcast %c16_i32_12 : i32 to vector<1x256xi32>
    %33 = arith.cmpi slt, %31, %32 : vector<1x256xi32>
    %34 = arith.andi %29, %33 : vector<1x256xi1>
    %35 = arith.extui %34 : vector<1x256xi1> to vector<1x256xi32>
    %36 = arith.sitofp %35 : vector<1x256xi32> to vector<1x256xf32>
    %c-1_i32 = arith.constant -1 : i32
    %37 = vector.broadcast %c-1_i32 : i32 to vector<1x256xi32>
    %38 = arith.addi %25, %37 : vector<1x256xi32>
    %c0_i32_13 = arith.constant 0 : i32
    %39 = vector.broadcast %c0_i32_13 : i32 to vector<1x256xi32>
    %40 = arith.cmpi sge, %38, %39 : vector<1x256xi32>
    %c-1_i32_14 = arith.constant -1 : i32
    %41 = vector.broadcast %c-1_i32_14 : i32 to vector<1x256xi32>
    %42 = arith.addi %25, %41 : vector<1x256xi32>
    %c16_i32_15 = arith.constant 16 : i32
    %43 = vector.broadcast %c16_i32_15 : i32 to vector<1x256xi32>
    %44 = arith.cmpi slt, %42, %43 : vector<1x256xi32>
    %45 = arith.andi %40, %44 : vector<1x256xi1>
    %46 = arith.extui %45 : vector<1x256xi1> to vector<1x256xi32>
    %47 = arith.sitofp %46 : vector<1x256xi32> to vector<1x256xf32>
    %c1_i32_16 = arith.constant 1 : i32
    %48 = vector.broadcast %c1_i32_16 : i32 to vector<1x256xi32>
    %49 = arith.addi %25, %48 : vector<1x256xi32>
    %c0_i32_17 = arith.constant 0 : i32
    %50 = vector.broadcast %c0_i32_17 : i32 to vector<1x256xi32>
    %51 = arith.cmpi sge, %49, %50 : vector<1x256xi32>
    %c1_i32_18 = arith.constant 1 : i32
    %52 = vector.broadcast %c1_i32_18 : i32 to vector<1x256xi32>
    %53 = arith.addi %25, %52 : vector<1x256xi32>
    %c16_i32_19 = arith.constant 16 : i32
    %54 = vector.broadcast %c16_i32_19 : i32 to vector<1x256xi32>
    %55 = arith.cmpi slt, %53, %54 : vector<1x256xi32>
    %56 = arith.andi %51, %55 : vector<1x256xi1>
    %57 = arith.extui %56 : vector<1x256xi1> to vector<1x256xi32>
    %58 = arith.sitofp %57 : vector<1x256xi32> to vector<1x256xf32>
    %c2_i32 = arith.constant 2 : i32
    %59 = vector.broadcast %c2_i32 : i32 to vector<1x256xi32>
    %60 = arith.addi %25, %59 : vector<1x256xi32>
    %c0_i32_20 = arith.constant 0 : i32
    %61 = vector.broadcast %c0_i32_20 : i32 to vector<1x256xi32>
    %62 = arith.cmpi sge, %60, %61 : vector<1x256xi32>
    %c2_i32_21 = arith.constant 2 : i32
    %63 = vector.broadcast %c2_i32_21 : i32 to vector<1x256xi32>
    %64 = arith.addi %25, %63 : vector<1x256xi32>
    %c16_i32_22 = arith.constant 16 : i32
    %65 = vector.broadcast %c16_i32_22 : i32 to vector<1x256xi32>
    %66 = arith.cmpi slt, %64, %65 : vector<1x256xi32>
    %67 = arith.andi %62, %66 : vector<1x256xi1>
    %68 = arith.extui %67 : vector<1x256xi1> to vector<1x256xi32>
    %69 = arith.sitofp %68 : vector<1x256xi32> to vector<1x256xf32>
    %70 = vector.extract_strided_slice %8 {offsets = [8, 0], sizes = [4, 256], strides = [1, 1]} : vector<16x256xf32> to vector<4x256xf32>
    %cst_23 = arith.constant 0.000000e+00 : f32
    %71 = vector.broadcast %cst_23 : f32 to vector<4x256xf32>
    %72 = arith.maximumf %70, %71 : vector<4x256xf32>
    %c1_i32_24 = arith.constant 1 : i32
    %73 = tpu.dynamic_rotate %72 by %c1_i32_24 dim 1 : vector<4x256xf32>, i32 -> vector<4x256xf32>
    %74 = vector.broadcast %47 : vector<1x256xf32> to vector<4x256xf32>
    %75 = arith.mulf %73, %74 : vector<4x256xf32>
    %76 = arith.truncf %75 : vector<4x256xf32> to vector<4x256xbf16>
    %77 = arith.truncf %72 : vector<4x256xf32> to vector<4x256xbf16>
    %c255_i32 = arith.constant 255 : i32
    %78 = tpu.dynamic_rotate %72 by %c255_i32 dim 1 : vector<4x256xf32>, i32 -> vector<4x256xf32>
    %79 = vector.broadcast %58 : vector<1x256xf32> to vector<4x256xf32>
    %80 = arith.mulf %78, %79 : vector<4x256xf32>
    %81 = arith.truncf %80 : vector<4x256xf32> to vector<4x256xbf16>
    %82 = tpu.concatenate %76, %77, %81 in 0 : vector<4x256xbf16>, vector<4x256xbf16>, vector<4x256xbf16> -> vector<12x256xbf16>
    %c0_25 = arith.constant 0 : index
    %c0_26 = arith.constant 0 : index
    %c0_27 = arith.constant 0 : index
    %83 = vector.load %arg5[%c0_25, %c0_26, %c0_27] : memref<2x4x12xbf16, #tpu.memory_space<vmem>>, vector<1x4x12xbf16>
    %84 = vector.shape_cast %83 : vector<1x4x12xbf16> to vector<4x12xbf16>
    %cst_28 = arith.constant dense<0.000000e+00> : vector<4x256xf32>
    %85 = tpu.matmul %84, %82, %cst_28 {dimension_numbers = #tpu.dot_dimension_numbers<[1], [0], [0], [1], [0, 0, 1, 1], [], []>} : vector<4x12xbf16>, vector<12x256xbf16>, vector<4x256xf32> -> vector<4x256xf32>
    %c0_29 = arith.constant 0 : index
    %c0_30 = arith.constant 0 : index
    %c0_31 = arith.constant 0 : index
    %86 = vector.load %arg6[%c0_29, %c0_30, %c0_31] : memref<2x4x1xf32, #tpu.memory_space<vmem>>, vector<1x4x1xf32>
    %87 = vector.shape_cast %86 : vector<1x4x1xf32> to vector<4x1xf32>
    %88 = vector.broadcast %87 : vector<4x1xf32> to vector<4x256xf32>
    %89 = arith.mulf %85, %88 : vector<4x256xf32>
    %c0_32 = arith.constant 0 : index
    %c0_33 = arith.constant 0 : index
    %c0_34 = arith.constant 0 : index
    %90 = vector.load %arg7[%c0_32, %c0_33, %c0_34] : memref<2x4x1xf32, #tpu.memory_space<vmem>>, vector<1x4x1xf32>
    %91 = vector.shape_cast %90 : vector<1x4x1xf32> to vector<4x1xf32>
    %92 = vector.broadcast %91 : vector<4x1xf32> to vector<4x256xf32>
    %93 = arith.addf %89, %92 : vector<4x256xf32>
    %94 = vector.extract_strided_slice %8 {offsets = [0, 0], sizes = [4, 256], strides = [1, 1]} : vector<16x256xf32> to vector<4x256xf32>
    %95 = arith.addf %93, %94 : vector<4x256xf32>
    %c0_35 = arith.constant 0 : index
    %c0_36 = arith.constant 0 : index
    %96 = vector.load %arg8[%c0_35, %c0_36] : memref<8x256xf32, #tpu.memory_space<vmem>>, vector<4x256xf32>
    tpu.vector_store %arg8[%c0_35, %c0_36], %95 {strides = array<i32>} : memref<8x256xf32, #tpu.memory_space<vmem>>, vector<4x256xf32>,
    %97 = vector.extract_strided_slice %8 {offsets = [12, 0], sizes = [4, 256], strides = [1, 1]} : vector<16x256xf32> to vector<4x256xf32>
    %cst_37 = arith.constant 0.000000e+00 : f32
    %98 = vector.broadcast %cst_37 : f32 to vector<4x256xf32>
    %99 = arith.maximumf %97, %98 : vector<4x256xf32>
    %c2_i32_38 = arith.constant 2 : i32
    %100 = tpu.dynamic_rotate %99 by %c2_i32_38 dim 1 : vector<4x256xf32>, i32 -> vector<4x256xf32>
    %101 = vector.broadcast %36 : vector<1x256xf32> to vector<4x256xf32>
    %102 = arith.mulf %100, %101 : vector<4x256xf32>
    %103 = arith.truncf %102 : vector<4x256xf32> to vector<4x256xbf16>
    %104 = arith.truncf %99 : vector<4x256xf32> to vector<4x256xbf16>
    %c254_i32 = arith.constant 254 : i32
    %105 = tpu.dynamic_rotate %99 by %c254_i32 dim 1 : vector<4x256xf32>, i32 -> vector<4x256xf32>
    %106 = vector.broadcast %69 : vector<1x256xf32> to vector<4x256xf32>
    %107 = arith.mulf %105, %106 : vector<4x256xf32>
    %108 = arith.truncf %107 : vector<4x256xf32> to vector<4x256xbf16>
    %109 = tpu.concatenate %103, %104, %108 in 0 : vector<4x256xbf16>, vector<4x256xbf16>, vector<4x256xbf16> -> vector<12x256xbf16>
    %c1 = arith.constant 1 : index
    %c0_39 = arith.constant 0 : index
    %c0_40 = arith.constant 0 : index
    %110 = vector.load %arg5[%c1, %c0_39, %c0_40] : memref<2x4x12xbf16, #tpu.memory_space<vmem>>, vector<1x4x12xbf16>
    %111 = vector.shape_cast %110 : vector<1x4x12xbf16> to vector<4x12xbf16>
    %cst_41 = arith.constant dense<0.000000e+00> : vector<4x256xf32>
    %112 = tpu.matmul %111, %109, %cst_41 {dimension_numbers = #tpu.dot_dimension_numbers<[1], [0], [0], [1], [0, 0, 1, 1], [], []>} : vector<4x12xbf16>, vector<12x256xbf16>, vector<4x256xf32> -> vector<4x256xf32>
    %c1_42 = arith.constant 1 : index
    %c0_43 = arith.constant 0 : index
    %c0_44 = arith.constant 0 : index
    %113 = vector.load %arg6[%c1_42, %c0_43, %c0_44] : memref<2x4x1xf32, #tpu.memory_space<vmem>>, vector<1x4x1xf32>
    %114 = vector.shape_cast %113 : vector<1x4x1xf32> to vector<4x1xf32>
    %115 = vector.broadcast %114 : vector<4x1xf32> to vector<4x256xf32>
    %116 = arith.mulf %112, %115 : vector<4x256xf32>
    %c1_45 = arith.constant 1 : index
    %c0_46 = arith.constant 0 : index
    %c0_47 = arith.constant 0 : index
    %117 = vector.load %arg7[%c1_45, %c0_46, %c0_47] : memref<2x4x1xf32, #tpu.memory_space<vmem>>, vector<1x4x1xf32>
    %118 = vector.shape_cast %117 : vector<1x4x1xf32> to vector<4x1xf32>
    %119 = vector.broadcast %118 : vector<4x1xf32> to vector<4x256xf32>
    %120 = arith.addf %116, %119 : vector<4x256xf32>
    %121 = vector.extract_strided_slice %8 {offsets = [4, 0], sizes = [4, 256], strides = [1, 1]} : vector<16x256xf32> to vector<4x256xf32>
    %122 = arith.addf %120, %121 : vector<4x256xf32>
    %c4 = arith.constant 4 : index
    %c0_48 = arith.constant 0 : index
    %123 = vector.load %arg8[%c4, %c0_48] : memref<8x256xf32, #tpu.memory_space<vmem>>, vector<4x256xf32>
    tpu.vector_store %arg8[%c4, %c0_48], %122 {strides = array<i32>} : memref<8x256xf32, #tpu.memory_space<vmem>>, vector<4x256xf32>,
    return
  }
  func.func @transform_0(%arg0: i32) -> (i32, i32) {
    %c0_i32 = arith.constant 0 : i32
    %c0_i32_0 = arith.constant 0 : i32
    return %c0_i32, %arg0 : i32, i32
  }
  func.func @transform_1(%arg0: i32) -> (i32, i32) {
    %c0_i32 = arith.constant 0 : i32
    %c0_i32_0 = arith.constant 0 : i32
    %c0_i32_1 = arith.constant 0 : i32
    return %c0_i32, %c0_i32_0 : i32, i32
  }
  func.func @transform_2(%arg0: i32) -> (i32, i32) {
    %c0_i32 = arith.constant 0 : i32
    %c0_i32_0 = arith.constant 0 : i32
    %c0_i32_1 = arith.constant 0 : i32
    return %c0_i32, %c0_i32_0 : i32, i32
  }
  func.func @transform_3(%arg0: i32) -> (i32, i32) {
    %c0_i32 = arith.constant 0 : i32
    %c0_i32_0 = arith.constant 0 : i32
    %c0_i32_1 = arith.constant 0 : i32
    return %c0_i32, %c0_i32_0 : i32, i32
  }
  func.func @transform_4(%arg0: i32) -> (i32, i32, i32) {
    %c0_i32 = arith.constant 0 : i32
    %c0_i32_0 = arith.constant 0 : i32
    %c0_i32_1 = arith.constant 0 : i32
    %c0_i32_2 = arith.constant 0 : i32
    return %c0_i32, %c0_i32_0, %c0_i32_1 : i32, i32, i32
  }
  func.func @transform_5(%arg0: i32) -> (i32, i32, i32) {
    %c0_i32 = arith.constant 0 : i32
    %c0_i32_0 = arith.constant 0 : i32
    %c0_i32_1 = arith.constant 0 : i32
    %c0_i32_2 = arith.constant 0 : i32
    return %c0_i32, %c0_i32_0, %c0_i32_1 : i32, i32, i32
  }
  func.func @transform_6(%arg0: i32) -> (i32, i32, i32) {
    %c0_i32 = arith.constant 0 : i32
    %c0_i32_0 = arith.constant 0 : i32
    %c0_i32_1 = arith.constant 0 : i32
    %c0_i32_2 = arith.constant 0 : i32
    return %c0_i32, %c0_i32_0, %c0_i32_1 : i32, i32, i32
  }
  func.func @transform_7(%arg0: i32) -> (i32, i32) {
    %c0_i32 = arith.constant 0 : i32
    %c0_i32_0 = arith.constant 0 : i32
    return %c0_i32, %arg0 : i32, i32
  }
}

</mosaic_0001>

<llo_original>
// kernel: tpu_custom_call.1
$region0: #{tpu_custom_call.1}
  #allocation0 [shape = 'u32[]', space=smem, size = 0x4, offset = 0x4, fixed_abs, tag = 'smem constant byte address 0x4 - core index']
  #allocation1 [shape = 'u32[144,128]{1,0:T(1,128)}', space=vmem, size = 0x12000, scoped, tag = 'internal scratch']
  %s0 = inlined_call_operand.vmem [shape: bf16[4,512], index: 0, kind: input, shape index: {}]
  %s1 = inlined_call_operand.vmem [shape: bf16[16,4], index: 1, kind: input, shape index: {}]
  %s2 = inlined_call_operand.vmem [shape: f32[16,1], index: 2, kind: input, shape index: {}]
  %s3 = inlined_call_operand.vmem [shape: f32[16,1], index: 3, kind: input, shape index: {}]
  %s4 = inlined_call_operand.vmem [shape: bf16[2,4,12], index: 4, kind: input, shape index: {}]
  %s5 = inlined_call_operand.vmem [shape: f32[2,4,1], index: 5, kind: input, shape index: {}]
  %s6 = inlined_call_operand.vmem [shape: f32[2,4,1], index: 6, kind: input, shape index: {}]
  %s7 = inlined_call_operand.hbm [shape: f32[8,512], index: 7, kind: output, shape index: {}]
  %s8 = sld [smem:[#allocation0]]
  $region61: #{tpu_custom_call.1} parent=0
    _
  %s10 = ssub.s32 1, %s8
  %s11 = scalar_select 0, %s10, %s8
  $region1: #{tpu_custom_call.1} parent=0
    #allocation2 [shape = 'u8[16384]{0}', space=vmem, size = 0x4000, scoped, tag = 'output window, operand 0']
    #allocation3 [shape = 's32[2]{0}', space=sflag, size = 0x8, scoped, tag = 'scoped memory for tpu_custom_call.1']
    %12 = vsyncpa [#allocation3], 0
    %s13 = scalar_lea.sflag [#allocation3], 1
    %14 = vsyncpa %s13, 0
    loop: start=0, step=1, limit=4
    $region2: #{tpu_custom_call.1} parent=1 // loop_pre_header
      _
    $region3: #{tpu_custom_call.1} parent=1 // loop_header
      %s16 = sphi 0, %s20
      %p17 = scmp.ge.s32.totalorder %s16, 4
      %s26 = sphi 0, %s28
      %s29 = sphi 0, %s26
      %s30 = sphi 0, %s29
      %s46 = sphi 0, %s30
      %s50 = sphi 0, %s50
      %s52 = sphi 0, %s50
      %s53 = sphi 0, %s52
      %s67 = sphi 0, %s53
      %s71 = sphi 0, %s71
      %s73 = sphi 0, %s71
      %s74 = sphi 0, %s73
      %s88 = sphi 0, %s74
      %s92 = sphi 0, %s92
      %s94 = sphi 0, %s92
      %s95 = sphi 0, %s94
      %s109 = sphi 0, %s95
      %s113 = sphi 0, %s113
      %s115 = sphi 0, %s113
      %s116 = sphi 0, %s115
      %s130 = sphi 0, %s116
      %s134 = sphi 0, %s134
      %s136 = sphi 0, %s134
      %s137 = sphi 0, %s136
      %s151 = sphi 0, %s137
      %s155 = sphi 0, %s155
      %s157 = sphi 0, %s155
      %s158 = sphi 0, %s157
      %s172 = sphi 0, %s158
      %s178 = sphi 0, %s180
      %s181 = sphi 0, %s178
      %s182 = sphi 0, %s181
      %s198 = sphi 0, %s182
    $region4: #{tpu_custom_call.1} parent=1 // loop_header_branch
      %19 = sbr.rel (%p17) target = $region8
    $region5: #{tpu_custom_call.1} parent=1 // loop_body
      %s21 = ssub.s32 %s16, 1
      %s22 = ssub.s32 %s16, 2
      %s23 = sadd.s32 %s16, 1
      %s24 = ssub.s32 %s16, %s23
      %p25 = scmp.eq.s32.totalorder %s24, 0
      %s27 = sadd.s32 %s26, 1
      %s28 = scalar_select %p25, %s26, %s27
      %p31 = pneg %p25
      %p32 = scmp.eq.s32.totalorder %s16, 1
      %p33 = por %p31, %p32
      %p34 = scmp.ne.s32.totalorder %s26, %s29
      %p35 = scmp.eq.s32.totalorder %s16, 0
      %p36 = por %p34, %p35
      %p37 = scmp.ne.s32.totalorder %s26, %s29
      %p38 = scmp.eq.s32.totalorder %s21, 1
      %p39 = por %p37, %p38
      %p40 = scmp.ne.s32.totalorder %s29, %s30
      %p41 = scmp.eq.s32.totalorder %s21, 0
      %p42 = por %p40, %p41
      %p43 = scmp.ne.s32.totalorder %s29, %s30
      %p44 = scmp.eq.s32.totalorder %s22, 1
      %p45 = por %p43, %p44
      %p47 = scmp.ne.s32.totalorder %s30, %s46
      %p48 = scmp.eq.s32.totalorder %s22, 0
      %p49 = por %p47, %p48
      %s51 = sadd.s32 %s50, 1
      %p54 = scmp.eq.s32.totalorder %s16, 1
      %p55 = scmp.ne.s32.totalorder %s50, %s52
      %p56 = scmp.eq.s32.totalorder %s16, 0
      %p57 = por %p55, %p56
      %p58 = scmp.ne.s32.totalorder %s50, %s52
      %p59 = scmp.eq.s32.totalorder %s21, 1
      %p60 = por %p58, %p59
      %p61 = scmp.ne.s32.totalorder %s52, %s53
      %p62 = scmp.eq.s32.totalorder %s21, 0
      %p63 = por %p61, %p62
      %p64 = scmp.ne.s32.totalorder %s52, %s53
      %p65 = scmp.eq.s32.totalorder %s22, 1
      %p66 = por %p64, %p65
      %p68 = scmp.ne.s32.totalorder %s53, %s67
      %p69 = scmp.eq.s32.totalorder %s22, 0
      %p70 = por %p68, %p69
      %s72 = sadd.s32 %s71, 1
      %p75 = scmp.eq.s32.totalorder %s16, 1
      %p76 = scmp.ne.s32.totalorder %s71, %s73
      %p77 = scmp.eq.s32.totalorder %s16, 0
      %p78 = por %p76, %p77
      %p79 = scmp.ne.s32.totalorder %s71, %s73
      %p80 = scmp.eq.s32.totalorder %s21, 1
      %p81 = por %p79, %p80
      %p82 = scmp.ne.s32.totalorder %s73, %s74
      %p83 = scmp.eq.s32.totalorder %s21, 0
      %p84 = por %p82, %p83
      %p85 = scmp.ne.s32.totalorder %s73, %s74
      %p86 = scmp.eq.s32.totalorder %s22, 1
      %p87 = por %p85, %p86
      %p89 = scmp.ne.s32.totalorder %s74, %s88
      %p90 = scmp.eq.s32.totalorder %s22, 0
      %p91 = por %p89, %p90
      %s93 = sadd.s32 %s92, 1
      %p96 = scmp.eq.s32.totalorder %s16, 1
      %p97 = scmp.ne.s32.totalorder %s92, %s94
      %p98 = scmp.eq.s32.totalorder %s16, 0
      %p99 = por %p97, %p98
      %p100 = scmp.ne.s32.totalorder %s92, %s94
      %p101 = scmp.eq.s32.totalorder %s21, 1
      %p102 = por %p100, %p101
      %p103 = scmp.ne.s32.totalorder %s94, %s95
      %p104 = scmp.eq.s32.totalorder %s21, 0
      %p105 = por %p103, %p104
      %p106 = scmp.ne.s32.totalorder %s94, %s95
      %p107 = scmp.eq.s32.totalorder %s22, 1
      %p108 = por %p106, %p107
      %p110 = scmp.ne.s32.totalorder %s95, %s109
      %p111 = scmp.eq.s32.totalorder %s22, 0
      %p112 = por %p110, %p111
      %s114 = sadd.s32 %s113, 1
      %p117 = scmp.eq.s32.totalorder %s16, 1
      %p118 = scmp.ne.s32.totalorder %s113, %s115
      %p119 = scmp.eq.s32.totalorder %s16, 0
      %p120 = por %p118, %p119
      %p121 = scmp.ne.s32.totalorder %s113, %s115
      %p122 = scmp.eq.s32.totalorder %s21, 1
      %p123 = por %p121, %p122
      %p124 = scmp.ne.s32.totalorder %s115, %s116
      %p125 = scmp.eq.s32.totalorder %s21, 0
      %p126 = por %p124, %p125
      %p127 = scmp.ne.s32.totalorder %s115, %s116
      %p128 = scmp.eq.s32.totalorder %s22, 1
      %p129 = por %p127, %p128
      %p131 = scmp.ne.s32.totalorder %s116, %s130
      %p132 = scmp.eq.s32.totalorder %s22, 0
      %p133 = por %p131, %p132
      %s135 = sadd.s32 %s134, 1
      %p138 = scmp.eq.s32.totalorder %s16, 1
      %p139 = scmp.ne.s32.totalorder %s134, %s136
      %p140 = scmp.eq.s32.totalorder %s16, 0
      %p141 = por %p139, %p140
      %p142 = scmp.ne.s32.totalorder %s134, %s136
      %p143 = scmp.eq.s32.totalorder %s21, 1
      %p144 = por %p142, %p143
      %p145 = scmp.ne.s32.totalorder %s136, %s137
      %p146 = scmp.eq.s32.totalorder %s21, 0
      %p147 = por %p145, %p146
      %p148 = scmp.ne.s32.totalorder %s136, %s137
      %p149 = scmp.eq.s32.totalorder %s22, 1
      %p150 = por %p148, %p149
      %p152 = scmp.ne.s32.totalorder %s137, %s151
      %p153 = scmp.eq.s32.totalorder %s22, 0
      %p154 = por %p152, %p153
      %s156 = sadd.s32 %s155, 1
      %p159 = scmp.eq.s32.totalorder %s16, 1
      %p160 = scmp.ne.s32.totalorder %s155, %s157
      %p161 = scmp.eq.s32.totalorder %s16, 0
      %p162 = por %p160, %p161
      %p163 = scmp.ne.s32.totalorder %s155, %s157
      %p164 = scmp.eq.s32.totalorder %s21, 1
      %p165 = por %p163, %p164
      %p166 = scmp.ne.s32.totalorder %s157, %s158
      %p167 = scmp.eq.s32.totalorder %s21, 0
      %p168 = por %p166, %p167
      %p169 = scmp.ne.s32.totalorder %s157, %s158
      %p170 = scmp.eq.s32.totalorder %s22, 1
      %p171 = por %p169, %p170
      %p173 = scmp.ne.s32.totalorder %s158, %s172
      %p174 = scmp.eq.s32.totalorder %s22, 0
      %p175 = por %p173, %p174
      %s176 = ssub.s32 %s16, %s23
      %p177 = scmp.eq.s32.totalorder %s176, 0
      %s179 = sadd.s32 %s178, 1
      %s180 = scalar_select %p177, %s178, %s179
      %p183 = pneg %p177
      %p184 = scmp.eq.s32.totalorder %s16, 1
      %p185 = por %p183, %p184
      %p186 = scmp.ne.s32.totalorder %s178, %s181
      %p187 = scmp.eq.s32.totalorder %s16, 0
      %p188 = por %p186, %p187
      %p189 = scmp.ne.s32.totalorder %s178, %s181
      %p190 = scmp.eq.s32.totalorder %s21, 1
      %p191 = por %p189, %p190
      %p192 = scmp.ne.s32.totalorder %s181, %s182
      %p193 = scmp.eq.s32.totalorder %s21, 0
      %p194 = por %p192, %p193
      %p195 = scmp.ne.s32.totalorder %s181, %s182
      %p196 = scmp.eq.s32.totalorder %s22, 1
      %p197 = por %p195, %p196
      %p199 = scmp.ne.s32.totalorder %s182, %s198
      %p200 = scmp.eq.s32.totalorder %s22, 0
      %p201 = por %p199, %p200
      %p202 = scmp.le.s32.totalorder 1, %s16
      %p203 = scmp.lt.s32.totalorder %s16, 3
      %p204 = pnand %p202, %p203
      %p205 = pneg %p204
      // Predicated region
      $region9: #{tpu_custom_call.1} parent=5 // pred_check
        _
      $region10: #{tpu_custom_call.1} parent=5 // pred_check_branch
        %207 = sbr.rel (%p204) target = $region12
      $region11: #{tpu_custom_call.1} parent=5 // pred_region
        %s208 = ssub.s32 %s16, 1
        // Predicated region
        $region13: #{tpu_custom_call.1} parent=11 // pred_check
          %p209 = pneg %p63
        $region14: #{tpu_custom_call.1} parent=11 // pred_check_branch
          %211 = sbr.rel (%p209) target = $region16
        $region15: #{tpu_custom_call.1} parent=11 // pred_region
          _
        $region16: #{tpu_custom_call.1} parent=11 // pred_fallthru
          _
        // Predicated region
        $region17: #{tpu_custom_call.1} parent=11 // pred_check
          %p212 = pneg %p84
        $region18: #{tpu_custom_call.1} parent=11 // pred_check_branch
          %214 = sbr.rel (%p212) target = $region20
        $region19: #{tpu_custom_call.1} parent=11 // pred_region
          _
        $region20: #{tpu_custom_call.1} parent=11 // pred_fallthru
          _
        // Predicated region
        $region21: #{tpu_custom_call.1} parent=11 // pred_check
          %p215 = pneg %p105
        $region22: #{tpu_custom_call.1} parent=11 // pred_check_branch
          %217 = sbr.rel (%p215) target = $region24
        $region23: #{tpu_custom_call.1} parent=11 // pred_region
          _
        $region24: #{tpu_custom_call.1} parent=11 // pred_fallthru
          _
        // Predicated region
        $region25: #{tpu_custom_call.1} parent=11 // pred_check
          %p218 = pneg %p126
        $region26: #{tpu_custom_call.1} parent=11 // pred_check_branch
          %220 = sbr.rel (%p218) target = $region28
        $region27: #{tpu_custom_call.1} parent=11 // pred_region
          _
        $region28: #{tpu_custom_call.1} parent=11 // pred_fallthru
          _
        // Predicated region
        $region29: #{tpu_custom_call.1} parent=11 // pred_check
          %p221 = pneg %p147
        $region30: #{tpu_custom_call.1} parent=11 // pred_check_branch
          %223 = sbr.rel (%p221) target = $region32
        $region31: #{tpu_custom_call.1} parent=11 // pred_region
          _
        $region32: #{tpu_custom_call.1} parent=11 // pred_fallthru
          _
        // Predicated region
        $region33: #{tpu_custom_call.1} parent=11 // pred_check
          %p224 = pneg %p168
        $region34: #{tpu_custom_call.1} parent=11 // pred_check_branch
          %226 = sbr.rel (%p224) target = $region36
        $region35: #{tpu_custom_call.1} parent=11 // pred_region
          _
        $region36: #{tpu_custom_call.1} parent=11 // pred_fallthru
          _
      $region12: #{tpu_custom_call.1} parent=5 // pred_fallthru
        _
      %p227 = scmp.lt.s32.totalorder %s16, 2
      // Predicated region
      $region37: #{tpu_custom_call.1} parent=5 // pred_check
        %p228 = pneg %p227
      $region38: #{tpu_custom_call.1} parent=5 // pred_check_branch
        %230 = sbr.rel (%p228) target = $region40
      $region39: #{tpu_custom_call.1} parent=5 // pred_region
        // Predicated region
        $region41: #{tpu_custom_call.1} parent=39 // pred_check
          %p231 = pneg %p36
        $region42: #{tpu_custom_call.1} parent=39 // pred_check_branch
          %233 = sbr.rel (%p231) target = $region44
        $region43: #{tpu_custom_call.1} parent=39 // pred_region
          %s234 = smul.u32 2, %s16
          %p235 = scmp.lt.s32.totalorder %s234, 3
          %s236 = scalar_select %p235, %s234, 3
          %s237 = smul.addr %s236, 2
          %s238 = scalar_lea.vmem %s0, %s237
          %s239 = smul.u32 2, %s16
        $region44: #{tpu_custom_call.1} parent=39 // pred_fallthru
          _
      $region40: #{tpu_custom_call.1} parent=5 // pred_fallthru
        _
      %p240 = scmp.le.s32.totalorder 1, %s16
      %p241 = scmp.lt.s32.totalorder %s16, 3
      %p242 = pnand %p240, %p241
      %p243 = pneg %p242
      // Predicated region
      $region45: #{tpu_custom_call.1} parent=5 // pred_check
        _
      $region46: #{tpu_custom_call.1} parent=5 // pred_check_branch
        %245 = sbr.rel (%p242) target = $region48
      $region47: #{tpu_custom_call.1} parent=5 // pred_region
        %s246 = ssub.s32 %s16, 1
        %s247 = smul.u32 2, %s21
        %p248 = scmp.lt.s32.totalorder %s247, 3
        %s249 = scalar_select %p248, %s247, 3
        %s250 = smul.addr %s249, 2
        %s251 = scalar_lea.vmem %s0, %s250
        %p252 = pneg %p42
        %p253 = pneg %p39
        %p254 = pneg %p63
        %p255 = pneg %p60
        %p256 = pneg %p84
        %p257 = pneg %p81
        %p258 = pneg %p105
        %p259 = pneg %p102
        %p260 = pneg %p126
        %p261 = pneg %p123
        %p262 = pneg %p147
        %p263 = pneg %p144
        %p264 = pneg %p168
        %p265 = pneg %p165
        %p266 = pneg %p194
        %p267 = pneg %p191
        %s268 = sand.u32 %s181, 1
        %s269 = scalar_lea.sflag [#allocation3], %s268
        %s270 = sand.u32 %s181, 1
        %s271 = smul.addr %s270, 16
        %s272 = scalar_lea.vmem [#allocation2], %s271
        %s273 = smul.u32 2, %s21
        %p274 = scmp.lt.s32.totalorder %s273, 3
        %s275 = scalar_select %p274, %s273, 3
        %s276 = smul.addr %s275, 2
        %s277 = scalar_lea.vmem %s0, %s276
        %s278 = smul.u32 2, %s21
        %s279 = smul.u32 2, %s21
        %v281 = vld [vmem:[%s277] sm:$0xf]
        %v282 = vld [vmem:[%s1] sm:$0xf]
        %v283 = vld [vmem:[%s1 + $0x4] sm:$0xf]
        %v286 = vunpack.c.l.b16 %v282
        %v287 = vunpack.c.l.b16 %v283
        %v288 = vpack.c.b16 %v287, %v286
        %v291 = vunpack.c.l.s4 1983009808
        %v292 = vunpack.c.0.s8 %v291
        %v293 = vlaneseq
        %v294 = vshrl.u32 %v293, 7
        %v295 = vsub.s32 %v292, %v294
        %v296 = vrot.slane %v281, %v295
        %v297 = vcombine.high %v296, %v296
        %vm298 = vcmask 31744
        %v300 = vsel %vm298, %v288, 0
        %vm302 = vcmask 1041408
        %v304 = vsel %vm302, %v296, 0
        %v307 = vsel %vm302, %v297, 0
        %309 = vmatprep.subr.bf16.mxu0 %v307
        %310 = vmatpush1.bf16.msra.mxu0 %v304
        %311 = vmatprep.subr.bf16.mxu0 0
        %312 = vmatpush1.bf16.msra.mxu0 0
        %313 = vmatprep.subr.bf16.mxu0 0
        %314 = vmatpush1.bf16.msra.mxu0 0
        %315 = vmatprep.subr.bf16.mxu0 0
        %316 = vmatpush1.bf16.msra.mxu0 0
        %317 = vmatprep.subr.bf16.mxu0 0
        %318 = vmatpush1.bf16.msra.mxu0 0
        %319 = vmatprep.subr.bf16.mxu0 0
        %320 = vmatpush1.bf16.msra.mxu0 0
        %321 = vmatprep.subr.bf16.mxu0 0
        %322 = vmatpush1.bf16.msra.mxu0 0
        %323 = vmatprep.subr.bf16.mxu0 0
        %324 = vmatpush1.bf16.msra.mxu0 0
        %325 = vmatprep.subr.bf16.mxu0 0
        %326 = vmatpush1.bf16.msra.mxu0 0
        %327 = vmatprep.subr.bf16.mxu0 0
        %328 = vmatpush1.bf16.msra.mxu0 0
        %329 = vmatprep.subr.bf16.mxu0 0
        %330 = vmatpush1.bf16.msra.mxu0 0
        %331 = vmatprep.subr.bf16.mxu0 0
        %332 = vmatpush1.bf16.msra.mxu0 0
        %333 = vmatprep.subr.bf16.mxu0 0
        %334 = vmatpush1.bf16.msra.mxu0 0
        %335 = vmatprep.subr.bf16.mxu0 0
        %336 = vmatpush1.bf16.msra.mxu0 0
        %337 = vmatprep.subr.bf16.mxu0 0
        %338 = vmatpush1.bf16.msra.mxu0 0
        %339 = vmatprep.subr.bf16.mxu0 0
        %340 = vmatpush1.bf16.msra.mxu0 0
        %341 = vmatprep.mubr.bf16.mxu0 0
        %342 = vmatmul.mubr.bf16.gmra.mrb[0].mxu0 %v300
        %v343 = vpop.f32.mrb[0].mxu0
        %v344 = vadd.f32 0.0, %v343
        %v345 = vpop.f32.mrb[0].mxu0
        %v346 = vadd.f32 0.0, %v345
        %v347 = vpop.f32.mrb[0].mxu0
        %v348 = vadd.f32 0.0, %v347
        %v349 = vpop.f32.mrb[0].mxu0
        %v350 = vadd.f32 0.0, %v349
        %351 = vdwg.mxu0
        %v352 = vld [vmem:[%s2] sm:$0xff]
        %v353 = vld [vmem:[%s2 + $0x8] sm:$0xff]
        %355 = vset.pattern.permute.xlu0 0
        %356 = vperm.xlu0 %355, %v352
        %v357 = vpop.permute.xlu0 %356
        %360 = vset.pattern.permute.xlu0 0
        %361 = vperm.xlu0 %360, %v353
        %v362 = vpop.permute.xlu0 %361
        %v364 = vmul.f32 %v344, %v357
        %v365 = vmul.f32 %v346, %v357
        %v366 = vmul.f32 %v348, %v362
        %v367 = vmul.f32 %v350, %v362
        %v368 = vld [vmem:[%s3] sm:$0xff]
        %v369 = vld [vmem:[%s3 + $0x8] sm:$0xff]
        %371 = vset.pattern.permute.xlu0 0
        %372 = vperm.xlu0 %371, %v368
        %v373 = vpop.permute.xlu0 %372
        %376 = vset.pattern.permute.xlu0 0
        %377 = vperm.xlu0 %376, %v369
        %v378 = vpop.permute.xlu0 %377
        %v380 = vadd.f32 %v364, %v373
        %v381 = vadd.f32 %v365, %v373
        %v382 = vadd.f32 %v366, %v378
        %v383 = vadd.f32 %v367, %v378
        %v384 = vlaneseq
        %v385 = vand.u32 %v384, 127
        %v386 = vadd.s32 %v385, 128
        %vm387 = vcmp.lt.s32.totalorder %v385, 0
        %v388 = vsub.s32 0, %v385
        %v389 = vsel %vm387, %v388, %v385
        %v390 = vshrl.u32 %v389, 4
        %v391 = vand.u32 %v389, 15
        %v392 = vsub.s32 0, %v391
        %v393 = vsel %vm387, %v392, %v391
        %vm394 = vcmp.lt.s32.totalorder %v386, 0
        %v395 = vsub.s32 0, %v386
        %v396 = vsel %vm394, %v395, %v386
        %v397 = vshrl.u32 %v396, 4
        %v398 = vand.u32 %v396, 15
        %v399 = vsub.s32 0, %v398
        %v400 = vsel %vm394, %v399, %v398
        %vm401 = vcmp.ne.s32.totalorder %v393, 0
        %vm402 = vcmp.ne.s32.totalorder %v400, 0
        %vm403 = vcmp.lt.s32.totalorder %v393, 0
        %vm404 = vcmp.lt.s32.totalorder %v400, 0
        %vm405 = vmand %vm403, %vm401
        %vm406 = vmand %vm404, %vm402
        %v407 = vadd.s32 %v393, 16
        %v408 = vadd.s32 %v400, 16
        %v409 = vsel %vm405, %v407, %v393
        %v410 = vsel %vm406, %v408, %v400
        %v411 = vadd.s32 %v409, 4294967294
        %v412 = vadd.s32 %v410, 4294967294
        %vm413 = vcmp.ge.s32.totalorder %v411, 0
        %vm414 = vcmp.ge.s32.totalorder %v412, 0
        %vm415 = vcmp.lt.s32.totalorder %v411, 16
        %vm416 = vcmp.lt.s32.totalorder %v412, 16
        %vm417 = vmand %vm413, %vm415
        %vm418 = vmand %vm414, %vm416
        %v419 = vsel %vm417, 1, 0
        %v420 = vsel %vm418, 1, 0
        %v421 = vcvt.s32.f32 %v419
        %v422 = vcvt.s32.f32 %v420
        %v423 = vadd.s32 %v409, 4294967295
        %v424 = vadd.s32 %v410, 4294967295
        %vm425 = vcmp.ge.s32.totalorder %v423, 0
        %vm426 = vcmp.ge.s32.totalorder %v424, 0
        %vm427 = vcmp.lt.s32.totalorder %v423, 16
        %vm428 = vcmp.lt.s32.totalorder %v424, 16
        %vm429 = vmand %vm425, %vm427
        %vm430 = vmand %vm426, %vm428
        %v431 = vsel %vm429, 1, 0
        %v432 = vsel %vm430, 1, 0
        %v433 = vcvt.s32.f32 %v431
        %v434 = vcvt.s32.f32 %v432
        %v435 = vadd.s32 %v409, 1
        %v436 = vadd.s32 %v410, 1
        %vm437 = vcmp.ge.s32.totalorder %v435, 0
        %vm438 = vcmp.ge.s32.totalorder %v436, 0
        %vm439 = vcmp.lt.s32.totalorder %v435, 16
        %vm440 = vcmp.lt.s32.totalorder %v436, 16
        %vm441 = vmand %vm437, %vm439
        %vm442 = vmand %vm438, %vm440
        %v443 = vsel %vm441, 1, 0
        %v444 = vsel %vm442, 1, 0
        %v445 = vcvt.s32.f32 %v443
        %v446 = vcvt.s32.f32 %v444
        %v447 = vadd.s32 %v409, 2
        %v448 = vadd.s32 %v410, 2
        %vm449 = vcmp.ge.s32.totalorder %v447, 0
        %vm450 = vcmp.ge.s32.totalorder %v448, 0
        %vm451 = vcmp.lt.s32.totalorder %v447, 16
        %vm452 = vcmp.lt.s32.totalorder %v448, 16
        %vm453 = vmand %vm449, %vm451
        %vm454 = vmand %vm450, %vm452
        %v455 = vsel %vm453, 1, 0
        %v456 = vsel %vm454, 1, 0
        %v457 = vcvt.s32.f32 %v455
        %v458 = vcvt.s32.f32 %v456
        %v459 = vmax.f32 %v382, 0.0
        %v460 = vmax.f32 %v383, 0.0
        %461 = vrot.lane.b32.xlu0 %v459, 1
        %v462 = vpop.permute.xlu0 %461
        %463 = vrot.lane.b32.xlu0 %v460, 1
        %v464 = vpop.permute.xlu0 %463
        %vm465 = vcmp.lt.s32.totalorder %v385, 1
        %v466 = vsel %vm465, %v462, %v464
        %v467 = vsel %vm465, %v464, %v462
        %v468 = vmul.f32 %v467, %v433
        %v469 = vmul.f32 %v466, %v434
        %v470 = vpack.c.bf16 %v468, %v468
        %v471 = vpack.c.bf16 %v469, %v469
        %v472 = vpack.c.bf16 %v459, %v459
        %v473 = vpack.c.bf16 %v460, %v460
        %474 = vrot.lane.b32.xlu0 %v459, 127
        %v475 = vpop.permute.xlu0 %474
        %476 = vrot.lane.b32.xlu0 %v460, 127
        %v477 = vpop.permute.xlu0 %476
        %vm478 = vcmp.lt.s32.totalorder %v385, 127
        %v479 = vsel %vm478, %v475, %v477
        %v480 = vsel %vm478, %v477, %v475
        %v481 = vmul.f32 %v479, %v445
        %v482 = vmul.f32 %v480, %v446
        %v483 = vpack.c.bf16 %v481, %v481
        %v484 = vpack.c.bf16 %v482, %v482
        %v487 = vrot.slane %v472, 6
        %v488 = vrot.slane %v473, 6
        %v491 = vrot.slane %v483, 4
        %v492 = vrot.slane %v484, 4
        %v495 = vsel %vm302, %v470, %v487
        %v498 = vsel %vm302, %v471, %v488
        %vm499 = vcmask 1043456
        %v501 = vsel %vm499, %v495, %v491
        %v503 = vsel %vm499, %v498, %v492
        %v504 = vld [vmem:[%s4] sm:$0x3]
        %vm505 = vcmask 97280
        %v507 = vsel %vm505, %v504, 0
        %vm509 = vcmask 1045504
        %v510 = vsel %vm509, %v501, 0
        %v512 = vsel %vm509, %v503, 0
        %514 = vmatprep.subr.bf16.mxu0 %v512
        %515 = vmatpush1.bf16.msra.mxu0 %v510
        %516 = vmatprep.subr.bf16.mxu0 0
        %517 = vmatpush1.bf16.msra.mxu0 0
        %518 = vmatprep.subr.bf16.mxu0 0
        %519 = vmatpush1.bf16.msra.mxu0 0
        %520 = vmatprep.subr.bf16.mxu0 0
        %521 = vmatpush1.bf16.msra.mxu0 0
        %522 = vmatprep.subr.bf16.mxu0 0
        %523 = vmatpush1.bf16.msra.mxu0 0
        %524 = vmatprep.subr.bf16.mxu0 0
        %525 = vmatpush1.bf16.msra.mxu0 0
        %526 = vmatprep.subr.bf16.mxu0 0
        %527 = vmatpush1.bf16.msra.mxu0 0
        %528 = vmatprep.subr.bf16.mxu0 0
        %529 = vmatpush1.bf16.msra.mxu0 0
        %530 = vmatprep.subr.bf16.mxu0 0
        %531 = vmatpush1.bf16.msra.mxu0 0
        %532 = vmatprep.subr.bf16.mxu0 0
        %533 = vmatpush1.bf16.msra.mxu0 0
        %534 = vmatprep.subr.bf16.mxu0 0
        %535 = vmatpush1.bf16.msra.mxu0 0
        %536 = vmatprep.subr.bf16.mxu0 0
        %537 = vmatpush1.bf16.msra.mxu0 0
        %538 = vmatprep.subr.bf16.mxu0 0
        %539 = vmatpush1.bf16.msra.mxu0 0
        %540 = vmatprep.subr.bf16.mxu0 0
        %541 = vmatpush1.bf16.msra.mxu0 0
        %542 = vmatprep.subr.bf16.mxu0 0
        %543 = vmatpush1.bf16.msra.mxu0 0
        %544 = vmatprep.subr.bf16.mxu0 0
        %545 = vmatpush1.bf16.msra.mxu0 0
        %546 = vmatprep.mubr.bf16.mxu0 0
        %547 = vmatmul.mubr.bf16.gmra.mrb[0].mxu0 %v507
        %v548 = vpop.f32.mrb[0].mxu0
        %v549 = vadd.f32 0.0, %v548
        %v550 = vpop.f32.mrb[0].mxu0
        %v551 = vadd.f32 0.0, %v550
        %v552 = vpop.f32.mrb[0].mxu0
        %v553 = vpop.f32.mrb[0].mxu0
        %554 = vdwg.mxu0
        %v555 = vld [vmem:[%s5] sm:$0xf]
        %557 = vset.pattern.permute.xlu0 0
        %558 = vperm.xlu0 %557, %v555
        %v559 = vpop.permute.xlu0 %558
        %v561 = vmul.f32 %v549, %v559
        %v562 = vmul.f32 %v551, %v559
        %v563 = vld [vmem:[%s6] sm:$0xf]
        %565 = vset.pattern.permute.xlu0 0
        %566 = vperm.xlu0 %565, %v563
        %v567 = vpop.permute.xlu0 %566
        %v569 = vadd.f32 %v561, %v567
        %v570 = vadd.f32 %v562, %v567
        %v571 = vadd.f32 %v569, %v380
        %v572 = vadd.f32 %v570, %v381
        %573 = vst [vmem:[%s272] sm:$0xf] %v571
        %574 = vst [vmem:[%s272 + $0x8] sm:$0xf] %v572
        %v577 = vrot.slane %v459, 4
        %v578 = vrot.slane %v460, 4
        %581 = vrot.lane.b32.xlu0 %v577, 2
        %v582 = vpop.permute.xlu0 %581
        %583 = vrot.lane.b32.xlu0 %v578, 2
        %v584 = vpop.permute.xlu0 %583
        %vm585 = vcmp.lt.s32.totalorder %v385, 2
        %v586 = vsel %vm585, %v582, %v584
        %v587 = vsel %vm585, %v584, %v582
        %v588 = vmul.f32 %v587, %v421
        %v589 = vmul.f32 %v586, %v422
        %v590 = vpack.c.bf16 %v588, %v588
        %v591 = vpack.c.bf16 %v589, %v589
        %592 = vrot.lane.b32.xlu0 %v577, 126
        %v593 = vpop.permute.xlu0 %592
        %594 = vrot.lane.b32.xlu0 %v578, 126
        %v595 = vpop.permute.xlu0 %594
        %vm596 = vcmp.lt.s32.totalorder %v385, 126
        %v597 = vsel %vm596, %v593, %v595
        %v598 = vsel %vm596, %v595, %v593
        %v599 = vmul.f32 %v597, %v457
        %v600 = vmul.f32 %v598, %v458
        %v601 = vpack.c.bf16 %v599, %v599
        %v602 = vpack.c.bf16 %v600, %v600
        %v605 = vrot.slane %v601, 4
        %v606 = vrot.slane %v602, 4
        %v609 = vsel %vm302, %v590, %v472
        %v612 = vsel %vm302, %v591, %v473
        %v614 = vsel %vm499, %v609, %v605
        %v616 = vsel %vm499, %v612, %v606
        %s617 = scalar_lea.vmem %s4, 2
        %v618 = vld [vmem:[%s617] sm:$0x3]
        %v620 = vsel %vm505, %v618, 0
        %v622 = vsel %vm509, %v614, 0
        %v624 = vsel %vm509, %v616, 0
        %626 = vmatprep.subr.bf16.mxu0 %v624
        %627 = vmatpush1.bf16.msra.mxu0 %v622
        %628 = vmatprep.subr.bf16.mxu0 0
        %629 = vmatpush1.bf16.msra.mxu0 0
        %630 = vmatprep.subr.bf16.mxu0 0
        %631 = vmatpush1.bf16.msra.mxu0 0
        %632 = vmatprep.subr.bf16.mxu0 0
        %633 = vmatpush1.bf16.msra.mxu0 0
        %634 = vmatprep.subr.bf16.mxu0 0
        %635 = vmatpush1.bf16.msra.mxu0 0
        %636 = vmatprep.subr.bf16.mxu0 0
        %637 = vmatpush1.bf16.msra.mxu0 0
        %638 = vmatprep.subr.bf16.mxu0 0
        %639 = vmatpush1.bf16.msra.mxu0 0
        %640 = vmatprep.subr.bf16.mxu0 0
        %641 = vmatpush1.bf16.msra.mxu0 0
        %642 = vmatprep.subr.bf16.mxu0 0
        %643 = vmatpush1.bf16.msra.mxu0 0
        %644 = vmatprep.subr.bf16.mxu0 0
        %645 = vmatpush1.bf16.msra.mxu0 0
        %646 = vmatprep.subr.bf16.mxu0 0
        %647 = vmatpush1.bf16.msra.mxu0 0
        %648 = vmatprep.subr.bf16.mxu0 0
        %649 = vmatpush1.bf16.msra.mxu0 0
        %650 = vmatprep.subr.bf16.mxu0 0
        %651 = vmatpush1.bf16.msra.mxu0 0
        %652 = vmatprep.subr.bf16.mxu0 0
        %653 = vmatpush1.bf16.msra.mxu0 0
        %654 = vmatprep.subr.bf16.mxu0 0
        %655 = vmatpush1.bf16.msra.mxu0 0
        %656 = vmatprep.subr.bf16.mxu0 0
        %657 = vmatpush1.bf16.msra.mxu0 0
        %658 = vmatprep.mubr.bf16.mxu0 0
        %659 = vmatmul.mubr.bf16.gmra.mrb[0].mxu0 %v620
        %v660 = vpop.f32.mrb[0].mxu0
        %v661 = vadd.f32 0.0, %v660
        %v662 = vpop.f32.mrb[0].mxu0
        %v663 = vadd.f32 0.0, %v662
        %v664 = vpop.f32.mrb[0].mxu0
        %v665 = vpop.f32.mrb[0].mxu0
        %666 = vdwg.mxu0
        %s667 = scalar_lea.vmem %s5, 4
        %v668 = vld [vmem:[%s667] sm:$0xf]
        %670 = vset.pattern.permute.xlu0 0
        %671 = vperm.xlu0 %670, %v668
        %v672 = vpop.permute.xlu0 %671
        %v674 = vmul.f32 %v661, %v672
        %v675 = vmul.f32 %v663, %v672
        %s676 = scalar_lea.vmem %s6, 4
        %v677 = vld [vmem:[%s676] sm:$0xf]
        %679 = vset.pattern.permute.xlu0 0
        %680 = vperm.xlu0 %679, %v677
        %v681 = vpop.permute.xlu0 %680
        %v683 = vadd.f32 %v674, %v681
        %v684 = vadd.f32 %v675, %v681
        %v687 = vrot.slane %v380, 4
        %v688 = vrot.slane %v381, 4
        %v691 = vadd.f32 %v683, %v687
        %v692 = vadd.f32 %v684, %v688
        %v695 = vrot.slane %v691, 4
        %v696 = vrot.slane %v692, 4
        %699 = vst [vmem:[%s272] sm:$0xf0] %v695
        %700 = vst [vmem:[%s272 + $0x8] sm:$0xf0] %v696
        %s701 = sand.u32 %s181, 1
        %s702 = scalar_lea.sflag [#allocation3], %s701
        %s703 = sand.u32 %s181, 1
        %s704 = smul.addr %s703, 16
        %s705 = scalar_lea.vmem [#allocation2], %s704
        // Predicated region
        $region49: #{tpu_custom_call.1} parent=47 // pred_check
          %p706 = pneg %p191
        $region50: #{tpu_custom_call.1} parent=47 // pred_check_branch
          %708 = sbr.rel (%p706) target = $region52
        $region51: #{tpu_custom_call.1} parent=47 // pred_region
          %s709 = smul.u32 2, %s21
          %s711 = ssub.s32 256, 256
          %712 = vsyncadd %s702, %s711
          %s713 = smul.addr %s709, 128
          %s714 = scalar_lea.hbm %s7, %s713
          %s716 = sshll.u32 %s705, 4
          %s717 = int_to_ptr.vmem [resolvable:$true] %s716
          %719 = dma.vmem_to_hbm [thread:$0]  %s717, 256, %s714, %s702
        $region52: #{tpu_custom_call.1} parent=47 // pred_fallthru
          _
      $region48: #{tpu_custom_call.1} parent=5 // pred_fallthru
        _
      %p720 = scmp.le.s32.totalorder 2, %s16
      // Predicated region
      $region53: #{tpu_custom_call.1} parent=5 // pred_check
        %p721 = pneg %p720
      $region54: #{tpu_custom_call.1} parent=5 // pred_check_branch
        %723 = sbr.rel (%p721) target = $region56
      $region55: #{tpu_custom_call.1} parent=5 // pred_region
        %s724 = ssub.s32 %s16, 2
        // Predicated region
        $region57: #{tpu_custom_call.1} parent=55 // pred_check
          %p725 = pneg %p197
        $region58: #{tpu_custom_call.1} parent=55 // pred_check_branch
          %727 = sbr.rel (%p725) target = $region60
        $region59: #{tpu_custom_call.1} parent=55 // pred_region
          %s728 = sand.u32 %s182, 1
          %s729 = scalar_lea.sflag [#allocation3], %s728
          %s730 = sand.u32 %s182, 1
          %s731 = smul.addr %s730, 16
          %s732 = scalar_lea.vmem [#allocation2], %s731
          %733 = dma.done %s729, 256
        $region60: #{tpu_custom_call.1} parent=55 // pred_fallthru
          _
      $region56: #{tpu_custom_call.1} parent=5 // pred_fallthru
        _
    $region6: #{tpu_custom_call.1} parent=1 // loop_footer
      %s20 = sadd.s32 1, %s16
    $region7: #{tpu_custom_call.1} parent=1 // loop_footer_branch
      %15 = sbr.rel target = $region3
    $region8: #{tpu_custom_call.1} parent=1 // loop_exit
      _
    %734 = vsyncpa [#allocation3], 1
    %s735 = scalar_lea.sflag [#allocation3], 1
    %736 = vsyncpa %s735, 1

</llo_original>
